<compile_context>
chip_gen: v7x
topology: tpu7x:2x2x1
jax: 0.10.0
libtpu: 0.0.40
codegen_flags: <defaults>
</compile_context>

<pallas_src>
import jax
import jax.numpy as jnp
from jax import lax
from jax.experimental import pallas as pl
from jax.experimental.pallas import tpu as pltpu

LANES = 128
MAX_ROW_TILE = 1024   # (1024, 128) f32 = 512 KiB per input buffer
NUM_SHARDS = 2        # outer "parallel" grid axis (v7x megacore); fine on 1-TC chips


def _round_up(x, m):
    return ((x + m - 1) // m) * m


def _make_loss_kernel(threshold, outlier_weight, rows, row_tile, inner_steps,
                      needs_mask):
    threshold = float(threshold)
    outlier_weight = float(outlier_weight)

    def kernel(pred_ref, target_ref, out_ref, acc_ref):
        j = pl.program_id(1)

        # Init the vector accumulator at the start of each shard's sweep.
        @pl.when(j == 0)
        def _():
            acc_ref[...] = jnp.zeros_like(acc_ref)

        # Stream native dtype from HBM; widen to f32 for the math
        # (keeps v5e happy and halves HBM bytes for bf16/fp16 inputs).
        p = pred_ref[...].astype(jnp.float32)
        t = target_ref[...].astype(jnp.float32)
        err = jnp.abs(p - t)
        w = jnp.where(err > threshold,
                      jnp.float32(outlier_weight),
                      jnp.float32(1.0))
        contrib = w * err

        if needs_mask:
            # Mask rows past the logical end (boundary block / duplicated
            # clamped block). Pure VPU compare+select.
            i = pl.program_id(0)
            row_start = (i * inner_steps + j) * row_tile
            row_ids = row_start + lax.broadcasted_iota(
                jnp.int32, (row_tile, LANES), 0)
            contrib = jnp.where(row_ids < rows, contrib, jnp.float32(0.0))

        acc_ref[...] += contrib  # elementwise accumulate, no per-step XLU

        # One cross-lane reduction per shard, only on the last inner step.
        @pl.when(j == pl.num_programs(1) - 1)
        def _():
            partial = jnp.sum(acc_ref[...])
            out_ref[...] = jnp.broadcast_to(partial, out_ref.shape)

    return kernel


def outlier_aware_l1_loss(pred, target, threshold=0.5, outlier_weight=3.0,
                          reduction="mean"):
    assert pred.shape == target.shape
    n_elems = pred.size

    pred_f = pred.reshape(-1)
    target_f = target.reshape(-1)

    # Only pad when the element count is not lane-aligned (<= 127 elements of
    # zeros; |0-0| * 1.0 contributes 0 to the sum). Common NCHW sizes skip
    # this entirely, avoiding the full-array pad copy.
    rem = n_elems % LANES
    if rem:
        pad = LANES - rem
        pred_f = jnp.pad(pred_f, (0, pad))
        target_f = jnp.pad(target_f, (0, pad))

    rows = pred_f.size // LANES
    sublane = 16 if jnp.dtype(pred_f.dtype).itemsize < 4 else 8
    row_tile = min(MAX_ROW_TILE, _round_up(rows, sublane))
    total_blocks = pl.cdiv(rows, row_tile)
    num_shards = min(NUM_SHARDS, total_blocks)
    inner_steps = pl.cdiv(total_blocks, num_shards)
    needs_mask = (rows % row_tile != 0) or (num_shards * inner_steps != total_blocks)

    pred2d = pred_f.reshape(rows, LANES)
    target2d = target_f.reshape(rows, LANES)

    def in_index_map(i, j):
        blk = i * inner_steps + j
        # Clamp so boundary / overflow iterations still issue in-range DMAs;
        # the in-kernel row mask zeroes any duplicated contribution.
        return (jnp.minimum(blk, total_blocks - 1), 0)

    kernel = _make_loss_kernel(threshold, outlier_weight, rows, row_tile,
                               inner_steps, needs_mask)

    partials = pl.pallas_call(
        kernel,
        out_shape=jax.ShapeDtypeStruct((num_shards, 8, LANES), jnp.float32),
        grid_spec=pltpu.PrefetchScalarGridSpec(
            num_scalar_prefetch=0,
            grid=(num_shards, inner_steps),
            in_specs=[
                pl.BlockSpec((row_tile, LANES), in_index_map),
                pl.BlockSpec((row_tile, LANES), in_index_map),
            ],
            out_specs=pl.BlockSpec((1, 8, LANES), lambda i, j: (i, 0, 0)),
            scratch_shapes=[pltpu.VMEM((row_tile, LANES), jnp.float32)],
        ),
        compiler_params=pltpu.CompilerParams(
            dimension_semantics=("parallel", "arbitrary")),
    )(pred2d, target2d)

    total = jnp.sum(partials[:, 0, 0])
    if reduction == "mean":
        return total / jnp.float32(n_elems)
    return total


if __name__ == "__main__":
    key = jax.random.PRNGKey(0)
    k1, k2 = jax.random.split(key)
    # Small NCHW-like shapes: batch=2, channels=4, spatial=16x16.
    pred = jax.random.normal(k1, (2, 4, 16, 16), dtype=jnp.float32)
    target = jax.random.normal(k2, (2, 4, 16, 16), dtype=jnp.float32)

    loss = outlier_aware_l1_loss(pred, target, threshold=0.5,
                                 outlier_weight=3.0, reduction="mean")
    loss = jax.block_until_ready(loss)

    # Pure-JAX reference check.
    err = jnp.abs(pred - target)
    w = jnp.where(err > 0.5, 3.0, 1.0)
    ref = jnp.mean(w * err)
    assert jnp.allclose(loss, ref, rtol=1e-5, atol=1e-6), (loss, ref)

    print("KERNEL_OK")
</pallas_src>

<mosaic_0001>
module attributes {stable_mosaic.version = 11 : i64} {
  func.func @kernel(%arg0: i32, %arg1: i32, %arg2: memref<16x128xf32, #tpu.memory_space<vmem>>, %arg3: memref<16x128xf32, #tpu.memory_space<vmem>>, %arg4: memref<1x8x128xf32, #tpu.memory_space<vmem>>, %arg5: memref<16x128xf32, #tpu.memory_space<vmem>>) attributes {dimension_semantics = [#tpu.dimension_semantics<parallel>, #tpu.dimension_semantics<arbitrary>], iteration_bounds = array<i64: 1, 1>, scalar_prefetch = 0 : i64, scratch_operands = 1 : i64, tpu.core_type = #tpu.core_type<tc>, window_params = [{transform_indices = @transform_0, window_bounds = array<i64: 16, 128>}, {transform_indices = @transform_1, window_bounds = array<i64: 16, 128>}, {transform_indices = @transform_2, window_bounds = array<i64: 1, 8, 128>}]} {
    %c0_i32 = arith.constant 0 : i32
    %0 = arith.cmpi eq, %arg1, %c0_i32 : i32
    %1 = arith.extui %0 : i1 to i32
    %c0_i32_0 = arith.constant 0 : i32
    %2 = arith.cmpi ne, %1, %c0_i32_0 : i32
    scf.if %2 {
      %cst_12 = arith.constant 0.000000e+00 : f32
      %19 = vector.broadcast %cst_12 : f32 to vector<16x128xf32>
      %c0_13 = arith.constant 0 : index
      %c0_14 = arith.constant 0 : index
      %20 = vector.load %arg5[%c0_13, %c0_14] : memref<16x128xf32, #tpu.memory_space<vmem>>, vector<16x128xf32>
      tpu.vector_store %arg5[%c0_13, %c0_14], %19 {strides = array<i32>} : memref<16x128xf32, #tpu.memory_space<vmem>>, vector<16x128xf32>,
    } else {
    }
    %c0 = arith.constant 0 : index
    %c0_1 = arith.constant 0 : index
    %3 = vector.load %arg2[%c0, %c0_1] : memref<16x128xf32, #tpu.memory_space<vmem>>, vector<16x128xf32>
    %c0_2 = arith.constant 0 : index
    %c0_3 = arith.constant 0 : index
    %4 = vector.load %arg3[%c0_2, %c0_3] : memref<16x128xf32, #tpu.memory_space<vmem>>, vector<16x128xf32>
    %5 = arith.subf %3, %4 : vector<16x128xf32>
    %6 = math.absf %5 : vector<16x128xf32>
    %cst = arith.constant 5.000000e-01 : f32
    %7 = vector.broadcast %cst : f32 to vector<16x128xf32>
    %8 = arith.cmpf ogt, %6, %7 : vector<16x128xf32>
    %cst_4 = arith.constant 3.000000e+00 : f32
    %cst_5 = arith.constant 1.000000e+00 : f32
    %9 = vector.broadcast %cst_4 : f32 to vector<16x128xf32>
    %10 = vector.broadcast %cst_5 : f32 to vector<16x128xf32>
    %11 = arith.select %8, %9, %10 : vector<16x128xi1>, vector<16x128xf32>
    %12 = arith.mulf %11, %6 : vector<16x128xf32>
    %c0_6 = arith.constant 0 : index
    %c0_7 = arith.constant 0 : index
    %13 = vector.load %arg5[%c0_6, %c0_7] : memref<16x128xf32, #tpu.memory_space<vmem>>, vector<16x128xf32>
    %14 = arith.addf %13, %12 : vector<16x128xf32>
    %c0_8 = arith.constant 0 : index
    %c0_9 = arith.constant 0 : index
    %15 = vector.load %arg5[%c0_8, %c0_9] : memref<16x128xf32, #tpu.memory_space<vmem>>, vector<16x128xf32>
    tpu.vector_store %arg5[%c0_8, %c0_9], %14 {strides = array<i32>} : memref<16x128xf32, #tpu.memory_space<vmem>>, vector<16x128xf32>,
    %c0_i32_10 = arith.constant 0 : i32
    %16 = arith.cmpi eq, %arg1, %c0_i32_10 : i32
    %17 = arith.extui %16 : i1 to i32
    %c0_i32_11 = arith.constant 0 : i32
    %18 = arith.cmpi ne, %17, %c0_i32_11 : i32
    scf.if %18 {
      %c0_12 = arith.constant 0 : index
      %c0_13 = arith.constant 0 : index
      %19 = vector.load %arg5[%c0_12, %c0_13] : memref<16x128xf32, #tpu.memory_space<vmem>>, vector<16x128xf32>
      %20 = vector.shape_cast %19 : vector<16x128xf32> to vector<1x16x128xf32>
      %cst_14 = arith.constant dense<0.000000e+00> : vector<1xf32>
      %21 = vector.multi_reduction <add>, %20, %cst_14 [1, 2] : vector<1x16x128xf32> to vector<1xf32>
      %22 = vector.shape_cast %21 : vector<1xf32> to vector<1x1x1xf32>
      %23 = vector.extract %22[0, 0, 0] : f32 from vector<1x1x1xf32>
      %24 = vector.broadcast %23 : f32 to vector<1x8x128xf32>
      %c0_15 = arith.constant 0 : index
      %c0_16 = arith.constant 0 : index
      %c0_17 = arith.constant 0 : index
      %25 = vector.load %arg4[%c0_15, %c0_16, %c0_17] : memref<1x8x128xf32, #tpu.memory_space<vmem>>, vector<1x8x128xf32>
      tpu.vector_store %arg4[%c0_15, %c0_16, %c0_17], %24 {strides = array<i32>} : memref<1x8x128xf32, #tpu.memory_space<vmem>>, vector<1x8x128xf32>,
    } else {
    }
    return
  }
  func.func @transform_0(%arg0: i32, %arg1: i32) -> (i32, i32) {
    %c1_i32 = arith.constant 1 : i32
    %0 = arith.muli %arg0, %c1_i32 : i32
    %1 = arith.addi %0, %arg1 : i32
    %c0_i32 = arith.constant 0 : i32
    %2 = arith.minsi %1, %c0_i32 : i32
    %c0_i32_0 = arith.constant 0 : i32
    %c0_i32_1 = arith.constant 0 : i32
    return %2, %c0_i32_0 : i32, i32
  }
  func.func @transform_1(%arg0: i32, %arg1: i32) -> (i32, i32) {
    %c1_i32 = arith.constant 1 : i32
    %0 = arith.muli %arg0, %c1_i32 : i32
    %1 = arith.addi %0, %arg1 : i32
    %c0_i32 = arith.constant 0 : i32
    %2 = arith.minsi %1, %c0_i32 : i32
    %c0_i32_0 = arith.constant 0 : i32
    %c0_i32_1 = arith.constant 0 : i32
    return %2, %c0_i32_0 : i32, i32
  }
  func.func @transform_2(%arg0: i32, %arg1: i32) -> (i32, i32, i32) {
    %c0_i32 = arith.constant 0 : i32
    %c0_i32_0 = arith.constant 0 : i32
    %c0_i32_1 = arith.constant 0 : i32
    return %arg0, %c0_i32, %c0_i32_0 : i32, i32, i32
  }
}

</mosaic_0001>

<llo_original>
// kernel: tpu_custom_call.1
$region0: #{tpu_custom_call.1}
  #allocation0 [shape = 'u32[]', space=smem, size = 0x4, offset = 0x4, fixed_abs, tag = 'smem constant byte address 0x4 - core index']
  #allocation1 [shape = 'u32[144,128]{1,0:T(1,128)}', space=vmem, size = 0x12000, scoped, tag = 'internal scratch']
  #allocation2 [shape = 'f32[16,128]{1,0:T(8,128)}', space=vmem, size = 0x2000, scoped, tag = 'scratch operand']
  %s0 = inlined_call_operand.hbm [shape: f32[16,128], index: 0, kind: input, shape index: {}]
  %s1 = inlined_call_operand.hbm [shape: f32[16,128], index: 1, kind: input, shape index: {}]
  %s2 = inlined_call_operand.hbm [shape: f32[1,8,128], index: 2, kind: output, shape index: {}]
  %s3 = sld [smem:[#allocation0]]
  $region34: #{tpu_custom_call.1} parent=0
    _
  %s5 = ssub.s32 1, %s3
  %s6 = scalar_select 0, %s5, %s3
  $region1: #{tpu_custom_call.1} parent=0
    #allocation3 [shape = 'u8[8192]{0}', space=vmem, size = 0x2000, scoped, tag = 'input window, operand 0, single buffered']
    #allocation4 [shape = 's32[1]{0}', space=sflag, size = 0x4, scoped, tag = 'scoped memory for tpu_custom_call.1']
    #allocation5 [shape = 's32[1]{0}', space=sflag, size = 0x4, scoped, tag = 'scoped memory for tpu_custom_call.1']
    #allocation6 [shape = 'u8[8192]{0}', space=vmem, size = 0x2000, scoped, tag = 'input window, operand 1, single buffered']
    #allocation7 [shape = 's32[1]{0}', space=sflag, size = 0x4, scoped, tag = 'scoped memory for tpu_custom_call.1']
    #allocation8 [shape = 'u8[4096]{0}', space=vmem, size = 0x1000, scoped, tag = 'output window, operand 0, single buffered']
    %7 = vsyncpa [#allocation4], 0
    %8 = vsyncpa [#allocation7], 0
    %9 = vsyncpa [#allocation5], 0
    // Predicated region
    $region2: #{tpu_custom_call.1} parent=1 // pred_check
      _
    $region3: #{tpu_custom_call.1} parent=1 // pred_check_branch
      %11 = sbr.rel (0) target = $region5
    $region4: #{tpu_custom_call.1} parent=1 // pred_region
      %s12 = sadd.s32 0, 0
      %p13 = scmp.lt.s32.totalorder %s12, 0
      %s14 = scalar_select %p13, %s12, 0
      %s15 = smul.u32 2, %s14
      %s17 = ssub.s32 256, 256
      %18 = vsyncadd [#allocation4], %s17
      %s19 = smul.addr %s15, 128
      %s20 = scalar_lea.hbm %s0, %s19
      %s21 = sshll.u32 [#allocation3], 4
      %s22 = int_to_ptr.vmem [resolvable:$true] %s21
      %27 = dma.hbm_to_vmem [thread:$0]  %s20, 256, %s22, [#allocation4], 128, 128, 8
    $region5: #{tpu_custom_call.1} parent=1 // pred_fallthru
      _
    // Predicated region
    $region6: #{tpu_custom_call.1} parent=1 // pred_check
      _
    $region7: #{tpu_custom_call.1} parent=1 // pred_check_branch
      %29 = sbr.rel (0) target = $region9
    $region8: #{tpu_custom_call.1} parent=1 // pred_region
      %s30 = sadd.s32 0, 0
      %p31 = scmp.lt.s32.totalorder %s30, 0
      %s32 = scalar_select %p31, %s30, 0
      %s33 = smul.u32 2, %s32
      %s35 = ssub.s32 256, 256
      %36 = vsyncadd [#allocation7], %s35
      %s37 = smul.addr %s33, 128
      %s38 = scalar_lea.hbm %s1, %s37
      %s39 = sshll.u32 [#allocation6], 4
      %s40 = int_to_ptr.vmem [resolvable:$true] %s39
      %45 = dma.hbm_to_vmem [thread:$0]  %s38, 256, %s40, [#allocation7], 128, 128, 8
    $region9: #{tpu_custom_call.1} parent=1 // pred_fallthru
      _
    // Predicated region
    $region10: #{tpu_custom_call.1} parent=1 // pred_check
      _
    $region11: #{tpu_custom_call.1} parent=1 // pred_check_branch
      %47 = sbr.rel (0) target = $region13
    $region12: #{tpu_custom_call.1} parent=1 // pred_region
      %48 = dma.done [#allocation4], 256
    $region13: #{tpu_custom_call.1} parent=1 // pred_fallthru
      _
    // Predicated region
    $region14: #{tpu_custom_call.1} parent=1 // pred_check
      _
    $region15: #{tpu_custom_call.1} parent=1 // pred_check_branch
      %50 = sbr.rel (0) target = $region17
    $region16: #{tpu_custom_call.1} parent=1 // pred_region
      %51 = dma.done [#allocation7], 256
    $region17: #{tpu_custom_call.1} parent=1 // pred_fallthru
      _
    %s52 = sadd.s32 0, 0
    %p53 = scmp.lt.s32.totalorder %s52, 0
    %s54 = scalar_select %p53, %s52, 0
    %s55 = smul.u32 2, %s54
    %s56 = sadd.s32 0, 0
    %p57 = scmp.lt.s32.totalorder %s56, 0
    %s58 = scalar_select %p57, %s56, 0
    %s59 = smul.u32 2, %s58
    %p60 = scmp.eq.s32.totalorder 0, 0
    // Predicated region
    $region18: #{tpu_custom_call.1} parent=1 // pred_check
      %p61 = pneg %p60
    $region19: #{tpu_custom_call.1} parent=1 // pred_check_branch
      %63 = sbr.rel (%p61) target = $region21
    $region20: #{tpu_custom_call.1} parent=1 // pred_region
      %64 = vst [vmem:[#allocation2] sm:$0xff] 0.0
      %65 = vst [vmem:[#allocation2 + $0x8] sm:$0xff] 0.0
    $region21: #{tpu_custom_call.1} parent=1 // pred_fallthru
      _
    %v66 = vld [vmem:[#allocation3] sm:$0xff]
    %v67 = vld [vmem:[#allocation3 + $0x8] sm:$0xff]
    %v68 = vld [vmem:[#allocation6] sm:$0xff]
    %v69 = vld [vmem:[#allocation6 + $0x8] sm:$0xff]
    %v70 = vsub.f32 %v66, %v68
    %v71 = vsub.f32 %v67, %v69
    %v72 = vand.u32 2147483647, %v70
    %v73 = vand.u32 2147483647, %v71
    %vm74 = vcmp.gt.f32.partialorder %v72, 0.5
    %vm75 = vcmp.gt.f32.partialorder %v73, 0.5
    %v76 = vsel %vm74, 3.0, 1.0
    %v77 = vsel %vm75, 3.0, 1.0
    %v78 = vmul.f32 %v76, %v72
    %v79 = vmul.f32 %v77, %v73
    %v80 = vld [vmem:[#allocation2] sm:$0xff]
    %v81 = vld [vmem:[#allocation2 + $0x8] sm:$0xff]
    %v82 = vadd.f32 %v80, %v78
    %v83 = vadd.f32 %v81, %v79
    %84 = vst [vmem:[#allocation2] sm:$0xff] %v82
    %85 = vst [vmem:[#allocation2 + $0x8] sm:$0xff] %v83
    // Predicated region
    $region22: #{tpu_custom_call.1} parent=1 // pred_check
      %p86 = pneg %p60
    $region23: #{tpu_custom_call.1} parent=1 // pred_check_branch
      %88 = sbr.rel (%p86) target = $region25
    $region24: #{tpu_custom_call.1} parent=1 // pred_region
      %v89 = vld [vmem:[#allocation2] sm:$0xff]
      %v90 = vld [vmem:[#allocation2 + $0x8] sm:$0xff]
      %v91 = vadd.f32 %v89, %v90
      %92 = vadd.xlane.f32.xlu0 %v91
      %v93 = vpop.xlane.xlu0 %92
      %v94 = vrot.slane %v93, 4
      %v95 = vadd.f32 %v93, %v94
      %v96 = vrot.slane %v95, 2
      %v97 = vadd.f32 %v95, %v96
      %v98 = vrot.slane %v97, 1
      %v99 = vadd.f32 %v97, %v98
      %s100 = vtos %v99
      %v101 = vstv %s100
      %102 = vst [vmem:[#allocation8] sm:$0xff] %v101
    $region25: #{tpu_custom_call.1} parent=1 // pred_fallthru
      _
    // Predicated region
    $region26: #{tpu_custom_call.1} parent=1 // pred_check
      _
    $region27: #{tpu_custom_call.1} parent=1 // pred_check_branch
      %104 = sbr.rel (0) target = $region29
    $region28: #{tpu_custom_call.1} parent=1 // pred_region
      %s106 = ssub.s32 128, 128
      %107 = vsyncadd [#allocation5], %s106
      %s109 = sshll.u32 [#allocation8], 4
      %s110 = int_to_ptr.vmem [resolvable:$true] %s109
      %112 = dma.vmem_to_hbm [thread:$0]  %s110, 128, %s2, [#allocation5]
    $region29: #{tpu_custom_call.1} parent=1 // pred_fallthru
      _
    // Predicated region
    $region30: #{tpu_custom_call.1} parent=1 // pred_check
      _
    $region31: #{tpu_custom_call.1} parent=1 // pred_check_branch
      %114 = sbr.rel (0) target = $region33
    $region32: #{tpu_custom_call.1} parent=1 // pred_region
      %115 = dma.done [#allocation5], 128
    $region33: #{tpu_custom_call.1} parent=1 // pred_fallthru
      _
    %116 = vsyncpa [#allocation4], 1
    %117 = vsyncpa [#allocation7], 1
    %118 = vsyncpa [#allocation5], 1

</llo_original>
